<compile_context>
chip_gen: v7x
topology: tpu7x:2x2x1
jax: 0.10.0
libtpu: 0.0.40
codegen_flags: <defaults>
</compile_context>

<pallas_src>
import functools

import jax
import jax.numpy as jnp
from jax.experimental import pallas as pl
from jax.experimental.pallas import tpu as pltpu


def _round_up(x, m):
    return ((x + m - 1) // m) * m


def _vmem_budget_bytes():
    """Per-core VMEM budget with headroom for compiler scratch / IO buffers."""
    cap = 64 << 20  # conservative default = v7x per-TC physical VMEM
    try:
        cap = int(pltpu.get_tpu_info().vmem_capacity_bytes)
    except Exception:
        pass
    # leave ~8 MiB headroom; never ask for more than ~112 MiB even on 128 MiB parts
    return int(min(max(cap - (8 << 20), 16 << 20), 112 << 20))


def _resident_spec(shape):
    """Grid-invariant, fully VMEM-resident block.

    Single-buffer it (constant index_map => double-buffering is pure waste);
    gracefully fall back if this Pallas version lacks pipeline_mode."""
    index_map = lambda i: (0,) * len(shape)
    try:
        return pl.BlockSpec(shape, index_map, pipeline_mode=pl.Buffered(1))
    except (TypeError, AttributeError):
        return pl.BlockSpec(shape, index_map)


def _mlp2_fused_kernel(x_ref, *refs, num_layers, sigmoid_output, compute_dtype):
    """One (tm, K_in_pad) row tile through the whole MLP.

    refs = (w0, b0, w1, b1, ..., o_ref)
      w_l: (in_pad_l, out_pad_l)  VMEM-resident, compute_dtype
      b_l: (1, out_pad_l)         VMEM-resident, f32
      o  : (tm, out_pad_last)
    """
    o_ref = refs[-1]
    h = x_ref[...].astype(compute_dtype)
    for l in range(num_layers):                       # static Python unroll
        w_ref = refs[2 * l]
        b_ref = refs[2 * l + 1]
        y = jnp.dot(h, w_ref[...], preferred_element_type=jnp.float32)
        y = y + b_ref[...].astype(jnp.float32)        # (tm, out) + (1, out)
        if l < num_layers - 1:
            h = jnp.maximum(y, 0.0).astype(compute_dtype)  # single cast per layer
        else:
            h = y                                     # keep f32 for sigmoid/store
    if sigmoid_output:
        h = jax.nn.sigmoid(h)
    o_ref[...] = h.astype(o_ref.dtype)


def mlp2_fused(x2d, w_pads, b_pads, *, sigmoid_output,
               tm_target=512, compute_dtype=jnp.bfloat16):
    """x2d: (M, K_in) f32. w_pads[l]: (in_pad_l, out_pad_l), b_pads[l]: (1, out_pad_l).
    Returns the padded (M_pad, out_pad_last) output; caller slices once."""
    M, K_in = x2d.shape
    num_layers = len(w_pads)
    K_in_pad = w_pads[0].shape[0]
    O_pad = w_pads[-1].shape[1]
    io_dtype = x2d.dtype
    itemsize = jnp.dtype(io_dtype).itemsize

    # Row tile: big enough to amortize the ~0.35us/step overhead and feed the
    # MXU, aligned to the sublane requirement of the IO dtype.
    align = 8 if itemsize == 4 else 16
    M_al = _round_up(M, align)
    tm = min(tm_target, M_al)
    M_pad = _round_up(M, tm)
    # Prefer >= 2 row tiles so ("parallel",) can feed both TCs on megacore parts.
    if M_pad // tm < 2 and tm >= 2 * align:
        tm = _round_up(pl.cdiv(M_al, 2), align)
        M_pad = _round_up(M, tm)
    grid = (M_pad // tm,)

    # Pad x ONCE: rows to M_pad, features only to the first layer's padded width.
    x_p = jnp.pad(x2d, ((0, M_pad - M), (0, K_in_pad - K_in)))

    # VMEM accounting: double-buffered row tiles + single-buffered resident
    # params + f32 activation headroom.
    w_bytes = sum(int(w.size) * jnp.dtype(w.dtype).itemsize for w in w_pads)
    b_bytes = sum(int(b.size) * jnp.dtype(b.dtype).itemsize for b in b_pads)
    in_blk = tm * K_in_pad * itemsize
    out_blk = tm * O_pad * itemsize
    max_feat = max([K_in_pad] + [w.shape[1] for w in w_pads])
    vmem_est = 2 * (in_blk + out_blk) + (w_bytes + b_bytes) + 4 * tm * max_feat * 4

    budget = _vmem_budget_bytes()
    if (w_bytes + b_bytes) + 2 * (in_blk + out_blk) > budget:
        # TODO(synk): tile the per-layer output-feature dim over an extra
        # "arbitrary" grid axis instead of requiring full weight residency.
        raise NotImplementedError(
            "MLP2 weight stack does not fit in VMEM; N-tiled fallback not implemented")
    vmem_limit = int(min(max(vmem_est + (4 << 20), 16 << 20), budget))

    flops = 2 * M_pad * sum(w.shape[0] * w.shape[1] for w in w_pads)
    cost = pl.CostEstimate(
        flops=flops,
        transcendentals=(M_pad * O_pad) if sigmoid_output else 0,
        bytes_accessed=int(M_pad * (K_in_pad + O_pad) * itemsize + w_bytes + b_bytes),
    )

    in_specs = [pl.BlockSpec((tm, K_in_pad), lambda i: (i, 0))]   # activations
    wb_args = []
    for w, b in zip(w_pads, b_pads):
        in_specs.append(_resident_spec(w.shape))                  # weight (resident)
        in_specs.append(_resident_spec(b.shape))                  # bias   (resident)
        wb_args += [w, b]

    out = pl.pallas_call(
        functools.partial(_mlp2_fused_kernel,
                          num_layers=num_layers,
                          sigmoid_output=sigmoid_output,
                          compute_dtype=compute_dtype),
        out_shape=jax.ShapeDtypeStruct((M_pad, O_pad), io_dtype),
        grid_spec=pltpu.PrefetchScalarGridSpec(
            num_scalar_prefetch=0,
            grid=grid,
            in_specs=in_specs,
            out_specs=pl.BlockSpec((tm, O_pad), lambda i: (i, 0)),  # lane-dense
        ),
        compiler_params=pltpu.CompilerParams(
            dimension_semantics=("parallel",),   # row tiles split across TCs
            vmem_limit_bytes=vmem_limit,
        ),
        cost_estimate=cost,
    )(x_p, *wb_args)

    return out


class MLP2Pallas:
    """JAX/Pallas equivalent of the PyTorch MLP2 module (fused forward)."""

    def __init__(self, input_dim, hidden_dim, output_dim, num_layers,
                 sigmoid_output=False, key=None, compute_dtype=jnp.bfloat16):
        self.num_layers = num_layers
        self.sigmoid_output = sigmoid_output
        self.output_dim = output_dim
        self.compute_dtype = compute_dtype

        h = [hidden_dim] * (num_layers - 1)
        dims_in = [input_dim] + h
        dims_out = h + [output_dim]
        if key is None:
            key = jax.random.PRNGKey(0)

        # Unpadded f32 params (reference / state_dict-equivalent, (in,out) layout).
        self.params = []
        for n_in, n_out in zip(dims_in, dims_out):
            key, kw, kb = jax.random.split(key, 3)
            bound = 1.0 / float(n_in) ** 0.5
            w = jax.random.uniform(kw, (n_in, n_out), jnp.float32, -bound, bound)
            b = jax.random.uniform(kb, (n_out,), jnp.float32, -bound, bound)
            self.params.append((w, b))

        # Per-layer lane-dense zero-padding (no global-max cube). Weights are
        # stored in compute_dtype (bf16 -> 2x MXU throughput, half the VMEM);
        # biases stay f32 (added to the f32 accumulator).
        self.w_pads, self.b_pads = [], []
        for (w, b) in self.params:
            n_in, n_out = w.shape
            ip, op = _round_up(n_in, 128), _round_up(n_out, 128)
            wp = jnp.zeros((ip, op), compute_dtype).at[:n_in, :n_out].set(
                w.astype(compute_dtype))
            bp = jnp.zeros((1, op), jnp.float32).at[0, :n_out].set(b)
            self.w_pads.append(wp)
            self.b_pads.append(bp)

    def __call__(self, x):
        orig_shape = x.shape
        x2d = x.reshape(-1, orig_shape[-1])
        M = x2d.shape[0]
        out = mlp2_fused(x2d, self.w_pads, self.b_pads,
                         sigmoid_output=self.sigmoid_output,
                         compute_dtype=self.compute_dtype)
        out = out[:M, :self.output_dim]              # single slice at the end
        return out.reshape(*orig_shape[:-1], self.output_dim)


def _mlp2_ref(x, params, sigmoid_output):
    """Pure-JAX f32 reference for correctness check."""
    n = len(params)
    for i, (w, b) in enumerate(params):
        x = x @ w + b
        if i < n - 1:
            x = jnp.maximum(x, 0.0)
    if sigmoid_output:
        x = jax.nn.sigmoid(x)
    return x


if __name__ == "__main__":
    # Small shapes consistent with the module: batch=2, seq=8, input=32,
    # hidden=64, output=16, 3 layers, sigmoid output.
    key = jax.random.PRNGKey(0)
    kx, kp = jax.random.split(key)

    B, S, D_in, D_h, D_out, L = 2, 8, 32, 64, 16, 3
    x = jax.random.normal(kx, (B, S, D_in), jnp.float32)

    # Production default: bf16 MXU compute.
    mlp_bf16 = MLP2Pallas(D_in, D_h, D_out, L, sigmoid_output=True, key=kp,
                          compute_dtype=jnp.bfloat16)
    out_bf16 = jax.block_until_ready(mlp_bf16(x))

    # Strict f32 path on identical params (same key => same params).
    mlp_f32 = MLP2Pallas(D_in, D_h, D_out, L, sigmoid_output=True, key=kp,
                         compute_dtype=jnp.float32)
    out_f32 = jax.block_until_ready(mlp_f32(x))

    ref = _mlp2_ref(x, mlp_f32.params, sigmoid_output=True)
    assert out_f32.shape == (B, S, D_out), out_f32.shape
    assert out_bf16.shape == (B, S, D_out), out_bf16.shape
    assert jnp.allclose(out_f32, ref, atol=2e-5, rtol=2e-5), (
        float(jnp.max(jnp.abs(out_f32 - ref))))
    assert jnp.allclose(out_bf16, ref, atol=2.5e-2, rtol=2.5e-2), (
        float(jnp.max(jnp.abs(out_bf16 - ref))))

    print("KERNEL_OK")
</pallas_src>

<mosaic_0001>
module attributes {stable_mosaic.version = 11 : i64} {
  func.func @_mlp2_fused_kernel(%arg0: i32, %arg1: memref<8x128xf32, #tpu.memory_space<vmem>>, %arg2: memref<128x128xbf16, #tpu.memory_space<vmem>>, %arg3: memref<1x128xf32, #tpu.memory_space<vmem>>, %arg4: memref<128x128xbf16, #tpu.memory_space<vmem>>, %arg5: memref<1x128xf32, #tpu.memory_space<vmem>>, %arg6: memref<128x128xbf16, #tpu.memory_space<vmem>>, %arg7: memref<1x128xf32, #tpu.memory_space<vmem>>, %arg8: memref<8x128xf32, #tpu.memory_space<vmem>>) attributes {dimension_semantics = [#tpu.dimension_semantics<parallel>], iteration_bounds = array<i64: 2>, scalar_prefetch = 0 : i64, scratch_operands = 0 : i64, tpu.core_type = #tpu.core_type<tc>, window_params = [{transform_indices = @transform_0, window_bounds = array<i64: 8, 128>}, {pipeline_mode = #tpu.pipeline_mode<synchronous>, transform_indices = @transform_1, window_bounds = array<i64: 128, 128>}, {pipeline_mode = #tpu.pipeline_mode<synchronous>, transform_indices = @transform_2, window_bounds = array<i64: 1, 128>}, {pipeline_mode = #tpu.pipeline_mode<synchronous>, transform_indices = @transform_3, window_bounds = array<i64: 128, 128>}, {pipeline_mode = #tpu.pipeline_mode<synchronous>, transform_indices = @transform_4, window_bounds = array<i64: 1, 128>}, {pipeline_mode = #tpu.pipeline_mode<synchronous>, transform_indices = @transform_5, window_bounds = array<i64: 128, 128>}, {pipeline_mode = #tpu.pipeline_mode<synchronous>, transform_indices = @transform_6, window_bounds = array<i64: 1, 128>}, {transform_indices = @transform_7, window_bounds = array<i64: 8, 128>}]} {
    %c0 = arith.constant 0 : index
    %c0_0 = arith.constant 0 : index
    %0 = vector.load %arg1[%c0, %c0_0] : memref<8x128xf32, #tpu.memory_space<vmem>>, vector<8x128xf32>
    %1 = arith.truncf %0 : vector<8x128xf32> to vector<8x128xbf16>
    %c0_1 = arith.constant 0 : index
    %c0_2 = arith.constant 0 : index
    %2 = vector.load %arg2[%c0_1, %c0_2] : memref<128x128xbf16, #tpu.memory_space<vmem>>, vector<128x128xbf16>
    %cst = arith.constant dense<0.000000e+00> : vector<8x128xf32>
    %3 = tpu.matmul %1, %2, %cst {dimension_numbers = #tpu.dot_dimension_numbers<[1], [0], [0], [1], [0, 0, 1, 1], [], []>} : vector<8x128xbf16>, vector<128x128xbf16>, vector<8x128xf32> -> vector<8x128xf32>
    %c0_3 = arith.constant 0 : index
    %c0_4 = arith.constant 0 : index
    %4 = vector.load %arg3[%c0_3, %c0_4] : memref<1x128xf32, #tpu.memory_space<vmem>>, vector<1x128xf32>
    %5 = vector.broadcast %4 : vector<1x128xf32> to vector<8x128xf32>
    %6 = arith.addf %3, %5 : vector<8x128xf32>
    %cst_5 = arith.constant 0.000000e+00 : f32
    %7 = vector.broadcast %cst_5 : f32 to vector<8x128xf32>
    %8 = arith.maximumf %6, %7 : vector<8x128xf32>
    %9 = arith.truncf %8 : vector<8x128xf32> to vector<8x128xbf16>
    %c0_6 = arith.constant 0 : index
    %c0_7 = arith.constant 0 : index
    %10 = vector.load %arg4[%c0_6, %c0_7] : memref<128x128xbf16, #tpu.memory_space<vmem>>, vector<128x128xbf16>
    %cst_8 = arith.constant dense<0.000000e+00> : vector<8x128xf32>
    %11 = tpu.matmul %9, %10, %cst_8 {dimension_numbers = #tpu.dot_dimension_numbers<[1], [0], [0], [1], [0, 0, 1, 1], [], []>} : vector<8x128xbf16>, vector<128x128xbf16>, vector<8x128xf32> -> vector<8x128xf32>
    %c0_9 = arith.constant 0 : index
    %c0_10 = arith.constant 0 : index
    %12 = vector.load %arg5[%c0_9, %c0_10] : memref<1x128xf32, #tpu.memory_space<vmem>>, vector<1x128xf32>
    %13 = vector.broadcast %12 : vector<1x128xf32> to vector<8x128xf32>
    %14 = arith.addf %11, %13 : vector<8x128xf32>
    %cst_11 = arith.constant 0.000000e+00 : f32
    %15 = vector.broadcast %cst_11 : f32 to vector<8x128xf32>
    %16 = arith.maximumf %14, %15 : vector<8x128xf32>
    %17 = arith.truncf %16 : vector<8x128xf32> to vector<8x128xbf16>
    %c0_12 = arith.constant 0 : index
    %c0_13 = arith.constant 0 : index
    %18 = vector.load %arg6[%c0_12, %c0_13] : memref<128x128xbf16, #tpu.memory_space<vmem>>, vector<128x128xbf16>
    %cst_14 = arith.constant dense<0.000000e+00> : vector<8x128xf32>
    %19 = tpu.matmul %17, %18, %cst_14 {dimension_numbers = #tpu.dot_dimension_numbers<[1], [0], [0], [1], [0, 0, 1, 1], [], []>} : vector<8x128xbf16>, vector<128x128xbf16>, vector<8x128xf32> -> vector<8x128xf32>
    %c0_15 = arith.constant 0 : index
    %c0_16 = arith.constant 0 : index
    %20 = vector.load %arg7[%c0_15, %c0_16] : memref<1x128xf32, #tpu.memory_space<vmem>>, vector<1x128xf32>
    %21 = vector.broadcast %20 : vector<1x128xf32> to vector<8x128xf32>
    %22 = arith.addf %19, %21 : vector<8x128xf32>
    %23 = arith.negf %22 : vector<8x128xf32>
    %24 = math.exp %23 : vector<8x128xf32>
    %cst_17 = arith.constant 1.000000e+00 : f32
    %25 = vector.broadcast %cst_17 : f32 to vector<8x128xf32>
    %26 = arith.addf %25, %24 : vector<8x128xf32>
    %27 = arith.divf %25, %26 : vector<8x128xf32>
    %c0_18 = arith.constant 0 : index
    %c0_19 = arith.constant 0 : index
    %28 = vector.load %arg8[%c0_18, %c0_19] : memref<8x128xf32, #tpu.memory_space<vmem>>, vector<8x128xf32>
    tpu.vector_store %arg8[%c0_18, %c0_19], %27 {strides = array<i32>} : memref<8x128xf32, #tpu.memory_space<vmem>>, vector<8x128xf32>,
    return
  }
  func.func @transform_0(%arg0: i32) -> (i32, i32) {
    %c0_i32 = arith.constant 0 : i32
    %c0_i32_0 = arith.constant 0 : i32
    return %arg0, %c0_i32 : i32, i32
  }
  func.func @transform_1(%arg0: i32) -> (i32, i32) {
    %c0_i32 = arith.constant 0 : i32
    %c0_i32_0 = arith.constant 0 : i32
    %c0_i32_1 = arith.constant 0 : i32
    return %c0_i32, %c0_i32_0 : i32, i32
  }
  func.func @transform_2(%arg0: i32) -> (i32, i32) {
    %c0_i32 = arith.constant 0 : i32
    %c0_i32_0 = arith.constant 0 : i32
    %c0_i32_1 = arith.constant 0 : i32
    return %c0_i32, %c0_i32_0 : i32, i32
  }
  func.func @transform_3(%arg0: i32) -> (i32, i32) {
    %c0_i32 = arith.constant 0 : i32
    %c0_i32_0 = arith.constant 0 : i32
    %c0_i32_1 = arith.constant 0 : i32
    return %c0_i32, %c0_i32_0 : i32, i32
  }
  func.func @transform_4(%arg0: i32) -> (i32, i32) {
    %c0_i32 = arith.constant 0 : i32
    %c0_i32_0 = arith.constant 0 : i32
    %c0_i32_1 = arith.constant 0 : i32
    return %c0_i32, %c0_i32_0 : i32, i32
  }
  func.func @transform_5(%arg0: i32) -> (i32, i32) {
    %c0_i32 = arith.constant 0 : i32
    %c0_i32_0 = arith.constant 0 : i32
    %c0_i32_1 = arith.constant 0 : i32
    return %c0_i32, %c0_i32_0 : i32, i32
  }
  func.func @transform_6(%arg0: i32) -> (i32, i32) {
    %c0_i32 = arith.constant 0 : i32
    %c0_i32_0 = arith.constant 0 : i32
    %c0_i32_1 = arith.constant 0 : i32
    return %c0_i32, %c0_i32_0 : i32, i32
  }
  func.func @transform_7(%arg0: i32) -> (i32, i32) {
    %c0_i32 = arith.constant 0 : i32
    %c0_i32_0 = arith.constant 0 : i32
    return %arg0, %c0_i32 : i32, i32
  }
}

</mosaic_0001>

<llo_original>
// kernel: tpu_custom_call.1
$region0: #{tpu_custom_call.1}
  #allocation0 [shape = 'u32[]', space=smem, size = 0x4, offset = 0x4, fixed_abs, tag = 'smem constant byte address 0x4 - core index']
  #allocation1 [shape = 'u32[144,128]{1,0:T(1,128)}', space=vmem, size = 0x12000, scoped, tag = 'internal scratch']
  %s0 = inlined_call_operand.hbm [shape: f32[16,128], index: 0, kind: input, shape index: {}]
  %s1 = inlined_call_operand.hbm [shape: bf16[128,128], index: 1, kind: input, shape index: {}]
  %s2 = inlined_call_operand.vmem [shape: f32[1,128], index: 2, kind: input, shape index: {}]
  %s3 = inlined_call_operand.hbm [shape: bf16[128,128], index: 3, kind: input, shape index: {}]
  %s4 = inlined_call_operand.vmem [shape: f32[1,128], index: 4, kind: input, shape index: {}]
  %s5 = inlined_call_operand.hbm [shape: bf16[128,128], index: 5, kind: input, shape index: {}]
  %s6 = inlined_call_operand.vmem [shape: f32[1,128], index: 6, kind: input, shape index: {}]
  %s7 = inlined_call_operand.hbm [shape: f32[16,128], index: 7, kind: output, shape index: {}]
  %s8 = sld [smem:[#allocation0]]
  $region77: #{tpu_custom_call.1} parent=0
    _
  %s10 = ssub.s32 1, %s8
  %s11 = scalar_select 0, %s10, %s8
  $region1: #{tpu_custom_call.1} parent=0
    #allocation2 [shape = 'u8[8192]{0}', space=vmem, size = 0x2000, scoped, tag = 'input window, operand 0']
    #allocation3 [shape = 's32[2]{0}', space=sflag, size = 0x8, scoped, tag = 'scoped memory for tpu_custom_call.1']
    #allocation4 [shape = 's32[2]{0}', space=sflag, size = 0x8, scoped, tag = 'scoped memory for tpu_custom_call.1']
    #allocation5 [shape = 'u8[32768]{0}', space=vmem, size = 0x8000, scoped, tag = 'input window, operand 1, single buffered']
    #allocation6 [shape = 's32[1]{0}', space=sflag, size = 0x4, scoped, tag = 'scoped memory for tpu_custom_call.1']
    #allocation7 [shape = 'u8[32768]{0}', space=vmem, size = 0x8000, scoped, tag = 'input window, operand 3, single buffered']
    #allocation8 [shape = 'u8[32768]{0}', space=vmem, size = 0x8000, scoped, tag = 'input window, operand 5, single buffered']
    #allocation9 [shape = 's32[1]{0}', space=sflag, size = 0x4, scoped, tag = 'scoped memory for tpu_custom_call.1']
    #allocation10 [shape = 'u8[8192]{0}', space=vmem, size = 0x2000, scoped, tag = 'output window, operand 0']
    %12 = vsyncpa [#allocation3], 0
    %s13 = scalar_lea.sflag [#allocation3], 1
    %14 = vsyncpa %s13, 0
    %15 = vsyncpa [#allocation6], 0
    %16 = vsyncpa [#allocation9], 0
    %17 = vsyncpa [#allocation4], 0
    %s18 = scalar_lea.sflag [#allocation4], 1
    %19 = vsyncpa %s18, 0
    loop: start=0, step=1, limit=4
    $region2: #{tpu_custom_call.1} parent=1 // loop_pre_header
      _
    $region3: #{tpu_custom_call.1} parent=1 // loop_header
      %s21 = sphi 0, %s25
      %p22 = scmp.ge.s32.totalorder %s21, 4
      %s31 = sphi 0, %s33
      %s34 = sphi 0, %s31
      %s35 = sphi 0, %s34
      %s51 = sphi 0, %s35
      %s55 = sphi 0, %s55
      %s57 = sphi 0, %s55
      %s58 = sphi 0, %s57
      %s72 = sphi 0, %s58
      %s76 = sphi 0, %s76
      %s78 = sphi 0, %s76
      %s79 = sphi 0, %s78
      %s93 = sphi 0, %s79
      %s97 = sphi 0, %s97
      %s99 = sphi 0, %s97
      %s100 = sphi 0, %s99
      %s114 = sphi 0, %s100
      %s118 = sphi 0, %s118
      %s120 = sphi 0, %s118
      %s121 = sphi 0, %s120
      %s135 = sphi 0, %s121
      %s139 = sphi 0, %s139
      %s141 = sphi 0, %s139
      %s142 = sphi 0, %s141
      %s156 = sphi 0, %s142
      %s160 = sphi 0, %s160
      %s162 = sphi 0, %s160
      %s163 = sphi 0, %s162
      %s177 = sphi 0, %s163
      %s183 = sphi 0, %s185
      %s186 = sphi 0, %s183
      %s187 = sphi 0, %s186
      %s203 = sphi 0, %s187
    $region4: #{tpu_custom_call.1} parent=1 // loop_header_branch
      %24 = sbr.rel (%p22) target = $region8
    $region5: #{tpu_custom_call.1} parent=1 // loop_body
      %s26 = ssub.s32 %s21, 1
      %s27 = ssub.s32 %s21, 2
      %s28 = sadd.s32 %s21, 1
      %s29 = ssub.s32 %s21, %s28
      %p30 = scmp.eq.s32.totalorder %s29, 0
      %s32 = sadd.s32 %s31, 1
      %s33 = scalar_select %p30, %s31, %s32
      %p36 = pneg %p30
      %p37 = scmp.eq.s32.totalorder %s21, 1
      %p38 = por %p36, %p37
      %p39 = scmp.ne.s32.totalorder %s31, %s34
      %p40 = scmp.eq.s32.totalorder %s21, 0
      %p41 = por %p39, %p40
      %p42 = scmp.ne.s32.totalorder %s31, %s34
      %p43 = scmp.eq.s32.totalorder %s26, 1
      %p44 = por %p42, %p43
      %p45 = scmp.ne.s32.totalorder %s34, %s35
      %p46 = scmp.eq.s32.totalorder %s26, 0
      %p47 = por %p45, %p46
      %p48 = scmp.ne.s32.totalorder %s34, %s35
      %p49 = scmp.eq.s32.totalorder %s27, 1
      %p50 = por %p48, %p49
      %p52 = scmp.ne.s32.totalorder %s35, %s51
      %p53 = scmp.eq.s32.totalorder %s27, 0
      %p54 = por %p52, %p53
      %s56 = sadd.s32 %s55, 1
      %p59 = scmp.eq.s32.totalorder %s21, 1
      %p60 = scmp.ne.s32.totalorder %s55, %s57
      %p61 = scmp.eq.s32.totalorder %s21, 0
      %p62 = por %p60, %p61
      %p63 = scmp.ne.s32.totalorder %s55, %s57
      %p64 = scmp.eq.s32.totalorder %s26, 1
      %p65 = por %p63, %p64
      %p66 = scmp.ne.s32.totalorder %s57, %s58
      %p67 = scmp.eq.s32.totalorder %s26, 0
      %p68 = por %p66, %p67
      %p69 = scmp.ne.s32.totalorder %s57, %s58
      %p70 = scmp.eq.s32.totalorder %s27, 1
      %p71 = por %p69, %p70
      %p73 = scmp.ne.s32.totalorder %s58, %s72
      %p74 = scmp.eq.s32.totalorder %s27, 0
      %p75 = por %p73, %p74
      %s77 = sadd.s32 %s76, 1
      %p80 = scmp.eq.s32.totalorder %s21, 1
      %p81 = scmp.ne.s32.totalorder %s76, %s78
      %p82 = scmp.eq.s32.totalorder %s21, 0
      %p83 = por %p81, %p82
      %p84 = scmp.ne.s32.totalorder %s76, %s78
      %p85 = scmp.eq.s32.totalorder %s26, 1
      %p86 = por %p84, %p85
      %p87 = scmp.ne.s32.totalorder %s78, %s79
      %p88 = scmp.eq.s32.totalorder %s26, 0
      %p89 = por %p87, %p88
      %p90 = scmp.ne.s32.totalorder %s78, %s79
      %p91 = scmp.eq.s32.totalorder %s27, 1
      %p92 = por %p90, %p91
      %p94 = scmp.ne.s32.totalorder %s79, %s93
      %p95 = scmp.eq.s32.totalorder %s27, 0
      %p96 = por %p94, %p95
      %s98 = sadd.s32 %s97, 1
      %p101 = scmp.eq.s32.totalorder %s21, 1
      %p102 = scmp.ne.s32.totalorder %s97, %s99
      %p103 = scmp.eq.s32.totalorder %s21, 0
      %p104 = por %p102, %p103
      %p105 = scmp.ne.s32.totalorder %s97, %s99
      %p106 = scmp.eq.s32.totalorder %s26, 1
      %p107 = por %p105, %p106
      %p108 = scmp.ne.s32.totalorder %s99, %s100
      %p109 = scmp.eq.s32.totalorder %s26, 0
      %p110 = por %p108, %p109
      %p111 = scmp.ne.s32.totalorder %s99, %s100
      %p112 = scmp.eq.s32.totalorder %s27, 1
      %p113 = por %p111, %p112
      %p115 = scmp.ne.s32.totalorder %s100, %s114
      %p116 = scmp.eq.s32.totalorder %s27, 0
      %p117 = por %p115, %p116
      %s119 = sadd.s32 %s118, 1
      %p122 = scmp.eq.s32.totalorder %s21, 1
      %p123 = scmp.ne.s32.totalorder %s118, %s120
      %p124 = scmp.eq.s32.totalorder %s21, 0
      %p125 = por %p123, %p124
      %p126 = scmp.ne.s32.totalorder %s118, %s120
      %p127 = scmp.eq.s32.totalorder %s26, 1
      %p128 = por %p126, %p127
      %p129 = scmp.ne.s32.totalorder %s120, %s121
      %p130 = scmp.eq.s32.totalorder %s26, 0
      %p131 = por %p129, %p130
      %p132 = scmp.ne.s32.totalorder %s120, %s121
      %p133 = scmp.eq.s32.totalorder %s27, 1
      %p134 = por %p132, %p133
      %p136 = scmp.ne.s32.totalorder %s121, %s135
      %p137 = scmp.eq.s32.totalorder %s27, 0
      %p138 = por %p136, %p137
      %s140 = sadd.s32 %s139, 1
      %p143 = scmp.eq.s32.totalorder %s21, 1
      %p144 = scmp.ne.s32.totalorder %s139, %s141
      %p145 = scmp.eq.s32.totalorder %s21, 0
      %p146 = por %p144, %p145
      %p147 = scmp.ne.s32.totalorder %s139, %s141
      %p148 = scmp.eq.s32.totalorder %s26, 1
      %p149 = por %p147, %p148
      %p150 = scmp.ne.s32.totalorder %s141, %s142
      %p151 = scmp.eq.s32.totalorder %s26, 0
      %p152 = por %p150, %p151
      %p153 = scmp.ne.s32.totalorder %s141, %s142
      %p154 = scmp.eq.s32.totalorder %s27, 1
      %p155 = por %p153, %p154
      %p157 = scmp.ne.s32.totalorder %s142, %s156
      %p158 = scmp.eq.s32.totalorder %s27, 0
      %p159 = por %p157, %p158
      %s161 = sadd.s32 %s160, 1
      %p164 = scmp.eq.s32.totalorder %s21, 1
      %p165 = scmp.ne.s32.totalorder %s160, %s162
      %p166 = scmp.eq.s32.totalorder %s21, 0
      %p167 = por %p165, %p166
      %p168 = scmp.ne.s32.totalorder %s160, %s162
      %p169 = scmp.eq.s32.totalorder %s26, 1
      %p170 = por %p168, %p169
      %p171 = scmp.ne.s32.totalorder %s162, %s163
      %p172 = scmp.eq.s32.totalorder %s26, 0
      %p173 = por %p171, %p172
      %p174 = scmp.ne.s32.totalorder %s162, %s163
      %p175 = scmp.eq.s32.totalorder %s27, 1
      %p176 = por %p174, %p175
      %p178 = scmp.ne.s32.totalorder %s163, %s177
      %p179 = scmp.eq.s32.totalorder %s27, 0
      %p180 = por %p178, %p179
      %s181 = ssub.s32 %s21, %s28
      %p182 = scmp.eq.s32.totalorder %s181, 0
      %s184 = sadd.s32 %s183, 1
      %s185 = scalar_select %p182, %s183, %s184
      %p188 = pneg %p182
      %p189 = scmp.eq.s32.totalorder %s21, 1
      %p190 = por %p188, %p189
      %p191 = scmp.ne.s32.totalorder %s183, %s186
      %p192 = scmp.eq.s32.totalorder %s21, 0
      %p193 = por %p191, %p192
      %p194 = scmp.ne.s32.totalorder %s183, %s186
      %p195 = scmp.eq.s32.totalorder %s26, 1
      %p196 = por %p194, %p195
      %p197 = scmp.ne.s32.totalorder %s186, %s187
      %p198 = scmp.eq.s32.totalorder %s26, 0
      %p199 = por %p197, %p198
      %p200 = scmp.ne.s32.totalorder %s186, %s187
      %p201 = scmp.eq.s32.totalorder %s27, 1
      %p202 = por %p200, %p201
      %p204 = scmp.ne.s32.totalorder %s187, %s203
      %p205 = scmp.eq.s32.totalorder %s27, 0
      %p206 = por %p204, %p205
      %p207 = scmp.le.s32.totalorder 1, %s21
      %p208 = scmp.lt.s32.totalorder %s21, 3
      %p209 = pnand %p207, %p208
      %p210 = pneg %p209
      // Predicated region
      $region9: #{tpu_custom_call.1} parent=5 // pred_check
        _
      $region10: #{tpu_custom_call.1} parent=5 // pred_check_branch
        %212 = sbr.rel (%p209) target = $region12
      $region11: #{tpu_custom_call.1} parent=5 // pred_region
        %s213 = ssub.s32 %s21, 1
        // Predicated region
        $region13: #{tpu_custom_call.1} parent=11 // pred_check
          %p214 = pneg %p68
        $region14: #{tpu_custom_call.1} parent=11 // pred_check_branch
          %216 = sbr.rel (%p214) target = $region16
        $region15: #{tpu_custom_call.1} parent=11 // pred_region
          %s218 = ssub.s32 1024, 1024
          %219 = vsyncadd [#allocation6], %s218
          %s220 = sshll.u32 [#allocation5], 4
          %s221 = int_to_ptr.vmem [resolvable:$true] %s220
          %226 = dma.hbm_to_vmem [thread:$0]  %s1, 1024, %s221, [#allocation6], 64, 64, 4
        $region16: #{tpu_custom_call.1} parent=11 // pred_fallthru
          _
        // Predicated region
        $region17: #{tpu_custom_call.1} parent=11 // pred_check
          %p227 = pneg %p89
        $region18: #{tpu_custom_call.1} parent=11 // pred_check_branch
          %229 = sbr.rel (%p227) target = $region20
        $region19: #{tpu_custom_call.1} parent=11 // pred_region
          _
        $region20: #{tpu_custom_call.1} parent=11 // pred_fallthru
          _
        // Predicated region
        $region21: #{tpu_custom_call.1} parent=11 // pred_check
          %p230 = pneg %p110
        $region22: #{tpu_custom_call.1} parent=11 // pred_check_branch
          %232 = sbr.rel (%p230) target = $region24
        $region23: #{tpu_custom_call.1} parent=11 // pred_region
          %s234 = ssub.s32 1024, 1024
          %235 = vsyncadd [#allocation6], %s234
          %s236 = sshll.u32 [#allocation7], 4
          %s237 = int_to_ptr.vmem [resolvable:$true] %s236
          %242 = dma.hbm_to_vmem [thread:$0]  %s3, 1024, %s237, [#allocation6], 64, 64, 4
        $region24: #{tpu_custom_call.1} parent=11 // pred_fallthru
          _
        // Predicated region
        $region25: #{tpu_custom_call.1} parent=11 // pred_check
          %p243 = pneg %p131
        $region26: #{tpu_custom_call.1} parent=11 // pred_check_branch
          %245 = sbr.rel (%p243) target = $region28
        $region27: #{tpu_custom_call.1} parent=11 // pred_region
          _
        $region28: #{tpu_custom_call.1} parent=11 // pred_fallthru
          _
        // Predicated region
        $region29: #{tpu_custom_call.1} parent=11 // pred_check
          %p246 = pneg %p152
        $region30: #{tpu_custom_call.1} parent=11 // pred_check_branch
          %248 = sbr.rel (%p246) target = $region32
        $region31: #{tpu_custom_call.1} parent=11 // pred_region
          %s250 = ssub.s32 1024, 1024
          %251 = vsyncadd [#allocation9], %s250
          %s252 = sshll.u32 [#allocation8], 4
          %s253 = int_to_ptr.vmem [resolvable:$true] %s252
          %258 = dma.hbm_to_vmem [thread:$0]  %s5, 1024, %s253, [#allocation9], 64, 64, 4
        $region32: #{tpu_custom_call.1} parent=11 // pred_fallthru
          _
        // Predicated region
        $region33: #{tpu_custom_call.1} parent=11 // pred_check
          %p259 = pneg %p173
        $region34: #{tpu_custom_call.1} parent=11 // pred_check_branch
          %261 = sbr.rel (%p259) target = $region36
        $region35: #{tpu_custom_call.1} parent=11 // pred_region
          _
        $region36: #{tpu_custom_call.1} parent=11 // pred_fallthru
          _
      $region12: #{tpu_custom_call.1} parent=5 // pred_fallthru
        _
      %p262 = scmp.lt.s32.totalorder %s21, 2
      // Predicated region
      $region37: #{tpu_custom_call.1} parent=5 // pred_check
        %p263 = pneg %p262
      $region38: #{tpu_custom_call.1} parent=5 // pred_check_branch
        %265 = sbr.rel (%p263) target = $region40
      $region39: #{tpu_custom_call.1} parent=5 // pred_region
        // Predicated region
        $region41: #{tpu_custom_call.1} parent=39 // pred_check
          %p266 = pneg %p41
        $region42: #{tpu_custom_call.1} parent=39 // pred_check_branch
          %268 = sbr.rel (%p266) target = $region44
        $region43: #{tpu_custom_call.1} parent=39 // pred_region
          %s269 = sand.u32 %s31, 1
          %s270 = scalar_lea.sflag [#allocation3], %s269
          %s271 = sand.u32 %s31, 1
          %s272 = smul.addr %s271, 8
          %s273 = scalar_lea.vmem [#allocation2], %s272
          %s275 = ssub.s32 128, 128
          %276 = vsyncadd %s270, %s275
          %s277 = smul.addr %s21, 128
          %s278 = scalar_lea.hbm %s0, %s277
          %s280 = sshll.u32 %s273, 4
          %s281 = int_to_ptr.vmem [resolvable:$true] %s280
          %283 = dma.hbm_to_vmem [thread:$0]  %s278, 128, %s281, %s270
        $region44: #{tpu_custom_call.1} parent=39 // pred_fallthru
          _
      $region40: #{tpu_custom_call.1} parent=5 // pred_fallthru
        _
      %p284 = scmp.le.s32.totalorder 1, %s21
      %p285 = scmp.lt.s32.totalorder %s21, 3
      %p286 = pnand %p284, %p285
      %p287 = pneg %p286
      // Predicated region
      $region45: #{tpu_custom_call.1} parent=5 // pred_check
        _
      $region46: #{tpu_custom_call.1} parent=5 // pred_check_branch
        %289 = sbr.rel (%p286) target = $region48
      $region47: #{tpu_custom_call.1} parent=5 // pred_region
        %s290 = ssub.s32 %s21, 1
        %s291 = sand.u32 %s34, 1
        %s292 = scalar_lea.sflag [#allocation3], %s291
        %s293 = sand.u32 %s34, 1
        %s294 = smul.addr %s293, 8
        %s295 = scalar_lea.vmem [#allocation2], %s294
        // Predicated region
        $region49: #{tpu_custom_call.1} parent=47 // pred_check
          %p296 = pneg %p47
        $region50: #{tpu_custom_call.1} parent=47 // pred_check_branch
          %298 = sbr.rel (%p296) target = $region52
        $region51: #{tpu_custom_call.1} parent=47 // pred_region
          %299 = dma.done %s292, 128
        $region52: #{tpu_custom_call.1} parent=47 // pred_fallthru
          _
        // Predicated region
        $region53: #{tpu_custom_call.1} parent=47 // pred_check
          %p300 = pneg %p68
        $region54: #{tpu_custom_call.1} parent=47 // pred_check_branch
          %302 = sbr.rel (%p300) target = $region56
        $region55: #{tpu_custom_call.1} parent=47 // pred_region
          %303 = dma.done [#allocation6], 1024
        $region56: #{tpu_custom_call.1} parent=47 // pred_fallthru
          _
        // Predicated region
        $region57: #{tpu_custom_call.1} parent=47 // pred_check
          %p304 = pneg %p110
        $region58: #{tpu_custom_call.1} parent=47 // pred_check_branch
          %306 = sbr.rel (%p304) target = $region60
        $region59: #{tpu_custom_call.1} parent=47 // pred_region
          %307 = dma.done [#allocation6], 1024
        $region60: #{tpu_custom_call.1} parent=47 // pred_fallthru
          _
        // Predicated region
        $region61: #{tpu_custom_call.1} parent=47 // pred_check
          %p308 = pneg %p152
        $region62: #{tpu_custom_call.1} parent=47 // pred_check_branch
          %310 = sbr.rel (%p308) target = $region64
        $region63: #{tpu_custom_call.1} parent=47 // pred_region
          %311 = dma.done [#allocation9], 1024
        $region64: #{tpu_custom_call.1} parent=47 // pred_fallthru
          _
        %s312 = sand.u32 %s34, 1
        %s313 = scalar_lea.sflag [#allocation3], %s312
        %s314 = sand.u32 %s34, 1
        %s315 = smul.addr %s314, 8
        %s316 = scalar_lea.vmem [#allocation2], %s315
        %p317 = pneg %p47
        %p318 = pneg %p44
        %p319 = pneg %p68
        %p320 = pneg %p65
        %p321 = pneg %p89
        %p322 = pneg %p86
        %p323 = pneg %p110
        %p324 = pneg %p107
        %p325 = pneg %p131
        %p326 = pneg %p128
        %p327 = pneg %p152
        %p328 = pneg %p149
        %p329 = pneg %p173
        %p330 = pneg %p170
        %p331 = pneg %p199
        %p332 = pneg %p196
        %s333 = sand.u32 %s186, 1
        %s334 = scalar_lea.sflag [#allocation4], %s333
        %s335 = sand.u32 %s186, 1
        %s336 = smul.addr %s335, 8
        %s337 = scalar_lea.vmem [#allocation10], %s336
        %v339 = vld [vmem:[%s295] sm:$0xff]
        %v340 = vpack.c.bf16 %v339, %v339
        %v341 = vld [vmem:[#allocation5] sm:$0xf]
        %v342 = vld [vmem:[#allocation5 + $0x4] sm:$0xf]
        %v343 = vld [vmem:[#allocation5 + $0x8] sm:$0xf]
        %v344 = vld [vmem:[#allocation5 + $0xc] sm:$0xf]
        %v345 = vld [vmem:[#allocation5 + $0x10] sm:$0xf]
        %v346 = vld [vmem:[#allocation5 + $0x14] sm:$0xf]
        %v347 = vld [vmem:[#allocation5 + $0x18] sm:$0xf]
        %v348 = vld [vmem:[#allocation5 + $0x1c] sm:$0xf]
        %v349 = vld [vmem:[#allocation5 + $0x20] sm:$0xf]
        %v350 = vld [vmem:[#allocation5 + $0x24] sm:$0xf]
        %v351 = vld [vmem:[#allocation5 + $0x28] sm:$0xf]
        %v352 = vld [vmem:[#allocation5 + $0x2c] sm:$0xf]
        %v353 = vld [vmem:[#allocation5 + $0x30] sm:$0xf]
        %v354 = vld [vmem:[#allocation5 + $0x34] sm:$0xf]
        %v355 = vld [vmem:[#allocation5 + $0x38] sm:$0xf]
        %v356 = vld [vmem:[#allocation5 + $0x3c] sm:$0xf]
        %v357 = vld [vmem:[%s2] sm:$0x1]
        %v359 = vlaneseq
        %v360 = vshrl.u32 %v359, 7
        %v361 = vsub.s32 0, %v360
        %v362 = vrot.slane %v357, %v361
        %v380 = vunpack.c.l.b16 %v341
        %v381 = vunpack.c.l.b16 %v342
        %v382 = vunpack.c.l.b16 %v343
        %v383 = vunpack.c.l.b16 %v344
        %v384 = vunpack.c.l.b16 %v345
        %v385 = vunpack.c.l.b16 %v346
        %v386 = vunpack.c.l.b16 %v347
        %v387 = vunpack.c.l.b16 %v348
        %v388 = vunpack.c.l.b16 %v349
        %v389 = vunpack.c.l.b16 %v350
        %v390 = vunpack.c.l.b16 %v351
        %v391 = vunpack.c.l.b16 %v352
        %v392 = vunpack.c.l.b16 %v353
        %v393 = vunpack.c.l.b16 %v354
        %v394 = vunpack.c.l.b16 %v355
        %v395 = vunpack.c.l.b16 %v356
        %v396 = vpack.c.b16 %v381, %v380
        %v397 = vpack.c.b16 %v383, %v382
        %v398 = vpack.c.b16 %v385, %v384
        %v399 = vpack.c.b16 %v387, %v386
        %v400 = vpack.c.b16 %v389, %v388
        %v401 = vpack.c.b16 %v391, %v390
        %v402 = vpack.c.b16 %v393, %v392
        %v403 = vpack.c.b16 %v395, %v394
        %412 = vmatprep.subr.bf16.mxu0 0
        %413 = vmatpush1.bf16.msra.mxu0 %v396
        %414 = vmatprep.subr.bf16.mxu0 0
        %415 = vmatpush1.bf16.msra.mxu0 %v397
        %416 = vmatprep.subr.bf16.mxu0 0
        %417 = vmatpush1.bf16.msra.mxu0 %v398
        %418 = vmatprep.subr.bf16.mxu0 0
        %419 = vmatpush1.bf16.msra.mxu0 %v399
        %420 = vmatprep.subr.bf16.mxu0 0
        %421 = vmatpush1.bf16.msra.mxu0 %v400
        %422 = vmatprep.subr.bf16.mxu0 0
        %423 = vmatpush1.bf16.msra.mxu0 %v401
        %424 = vmatprep.subr.bf16.mxu0 0
        %425 = vmatpush1.bf16.msra.mxu0 %v402
        %426 = vmatprep.subr.bf16.mxu0 0
        %427 = vmatpush1.bf16.msra.mxu0 %v403
        %428 = vmatprep.subr.bf16.mxu0 0
        %429 = vmatpush1.bf16.msra.mxu0 0
        %430 = vmatprep.subr.bf16.mxu0 0
        %431 = vmatpush1.bf16.msra.mxu0 0
        %432 = vmatprep.subr.bf16.mxu0 0
        %433 = vmatpush1.bf16.msra.mxu0 0
        %434 = vmatprep.subr.bf16.mxu0 0
        %435 = vmatpush1.bf16.msra.mxu0 0
        %436 = vmatprep.subr.bf16.mxu0 0
        %437 = vmatpush1.bf16.msra.mxu0 0
        %438 = vmatprep.subr.bf16.mxu0 0
        %439 = vmatpush1.bf16.msra.mxu0 0
        %440 = vmatprep.subr.bf16.mxu0 0
        %441 = vmatpush1.bf16.msra.mxu0 0
        %442 = vmatprep.subr.bf16.mxu0 0
        %443 = vmatpush1.bf16.msra.mxu0 0
        %444 = vmatprep.mubr.bf16.mxu0 0
        %445 = vmatmul.mubr.bf16.gmra.mrb[0].mxu0 %v340
        %v446 = vpop.f32.mrb[0].mxu0
        %v447 = vadd.f32 %v362, %v446
        %v448 = vpop.f32.mrb[0].mxu0
        %v449 = vpop.f32.mrb[0].mxu0
        %v450 = vpop.f32.mrb[0].mxu0
        %451 = vdwg.mxu0
        %v452 = vmax.f32 %v447, 0.0
        %v453 = vpack.c.bf16 %v452, %v452
        %v454 = vld [vmem:[#allocation7] sm:$0xf]
        %v455 = vld [vmem:[#allocation7 + $0x4] sm:$0xf]
        %v456 = vld [vmem:[#allocation7 + $0x8] sm:$0xf]
        %v457 = vld [vmem:[#allocation7 + $0xc] sm:$0xf]
        %v458 = vld [vmem:[#allocation7 + $0x10] sm:$0xf]
        %v459 = vld [vmem:[#allocation7 + $0x14] sm:$0xf]
        %v460 = vld [vmem:[#allocation7 + $0x18] sm:$0xf]
        %v461 = vld [vmem:[#allocation7 + $0x1c] sm:$0xf]
        %v462 = vld [vmem:[#allocation7 + $0x20] sm:$0xf]
        %v463 = vld [vmem:[#allocation7 + $0x24] sm:$0xf]
        %v464 = vld [vmem:[#allocation7 + $0x28] sm:$0xf]
        %v465 = vld [vmem:[#allocation7 + $0x2c] sm:$0xf]
        %v466 = vld [vmem:[#allocation7 + $0x30] sm:$0xf]
        %v467 = vld [vmem:[#allocation7 + $0x34] sm:$0xf]
        %v468 = vld [vmem:[#allocation7 + $0x38] sm:$0xf]
        %v469 = vld [vmem:[#allocation7 + $0x3c] sm:$0xf]
        %v470 = vld [vmem:[%s4] sm:$0x1]
        %v472 = vlaneseq
        %v473 = vshrl.u32 %v472, 7
        %v474 = vsub.s32 0, %v473
        %v475 = vrot.slane %v470, %v474
        %v493 = vunpack.c.l.b16 %v454
        %v494 = vunpack.c.l.b16 %v455
        %v495 = vunpack.c.l.b16 %v456
        %v496 = vunpack.c.l.b16 %v457
        %v497 = vunpack.c.l.b16 %v458
        %v498 = vunpack.c.l.b16 %v459
        %v499 = vunpack.c.l.b16 %v460
        %v500 = vunpack.c.l.b16 %v461
        %v501 = vunpack.c.l.b16 %v462
        %v502 = vunpack.c.l.b16 %v463
        %v503 = vunpack.c.l.b16 %v464
        %v504 = vunpack.c.l.b16 %v465
        %v505 = vunpack.c.l.b16 %v466
        %v506 = vunpack.c.l.b16 %v467
        %v507 = vunpack.c.l.b16 %v468
        %v508 = vunpack.c.l.b16 %v469
        %v509 = vpack.c.b16 %v494, %v493
        %v510 = vpack.c.b16 %v496, %v495
        %v511 = vpack.c.b16 %v498, %v497
        %v512 = vpack.c.b16 %v500, %v499
        %v513 = vpack.c.b16 %v502, %v501
        %v514 = vpack.c.b16 %v504, %v503
        %v515 = vpack.c.b16 %v506, %v505
        %v516 = vpack.c.b16 %v508, %v507
        %525 = vmatprep.subr.bf16.mxu0 0
        %526 = vmatpush1.bf16.msra.mxu0 %v509
        %527 = vmatprep.subr.bf16.mxu0 0
        %528 = vmatpush1.bf16.msra.mxu0 %v510
        %529 = vmatprep.subr.bf16.mxu0 0
        %530 = vmatpush1.bf16.msra.mxu0 %v511
        %531 = vmatprep.subr.bf16.mxu0 0
        %532 = vmatpush1.bf16.msra.mxu0 %v512
        %533 = vmatprep.subr.bf16.mxu0 0
        %534 = vmatpush1.bf16.msra.mxu0 %v513
        %535 = vmatprep.subr.bf16.mxu0 0
        %536 = vmatpush1.bf16.msra.mxu0 %v514
        %537 = vmatprep.subr.bf16.mxu0 0
        %538 = vmatpush1.bf16.msra.mxu0 %v515
        %539 = vmatprep.subr.bf16.mxu0 0
        %540 = vmatpush1.bf16.msra.mxu0 %v516
        %541 = vmatprep.subr.bf16.mxu0 0
        %542 = vmatpush1.bf16.msra.mxu0 0
        %543 = vmatprep.subr.bf16.mxu0 0
        %544 = vmatpush1.bf16.msra.mxu0 0
        %545 = vmatprep.subr.bf16.mxu0 0
        %546 = vmatpush1.bf16.msra.mxu0 0
        %547 = vmatprep.subr.bf16.mxu0 0
        %548 = vmatpush1.bf16.msra.mxu0 0
        %549 = vmatprep.subr.bf16.mxu0 0
        %550 = vmatpush1.bf16.msra.mxu0 0
        %551 = vmatprep.subr.bf16.mxu0 0
        %552 = vmatpush1.bf16.msra.mxu0 0
        %553 = vmatprep.subr.bf16.mxu0 0
        %554 = vmatpush1.bf16.msra.mxu0 0
        %555 = vmatprep.subr.bf16.mxu0 0
        %556 = vmatpush1.bf16.msra.mxu0 0
        %557 = vmatprep.mubr.bf16.mxu0 0
        %558 = vmatmul.mubr.bf16.gmra.mrb[0].mxu0 %v453
        %v559 = vpop.f32.mrb[0].mxu0
        %v560 = vadd.f32 %v475, %v559
        %v561 = vpop.f32.mrb[0].mxu0
        %v562 = vpop.f32.mrb[0].mxu0
        %v563 = vpop.f32.mrb[0].mxu0
        %564 = vdwg.mxu0
        %v565 = vmax.f32 %v560, 0.0
        %v566 = vpack.c.bf16 %v565, %v565
        %v567 = vld [vmem:[#allocation8] sm:$0xf]
        %v568 = vld [vmem:[#allocation8 + $0x4] sm:$0xf]
        %v569 = vld [vmem:[#allocation8 + $0x8] sm:$0xf]
        %v570 = vld [vmem:[#allocation8 + $0xc] sm:$0xf]
        %v571 = vld [vmem:[#allocation8 + $0x10] sm:$0xf]
        %v572 = vld [vmem:[#allocation8 + $0x14] sm:$0xf]
        %v573 = vld [vmem:[#allocation8 + $0x18] sm:$0xf]
        %v574 = vld [vmem:[#allocation8 + $0x1c] sm:$0xf]
        %v575 = vld [vmem:[#allocation8 + $0x20] sm:$0xf]
        %v576 = vld [vmem:[#allocation8 + $0x24] sm:$0xf]
        %v577 = vld [vmem:[#allocation8 + $0x28] sm:$0xf]
        %v578 = vld [vmem:[#allocation8 + $0x2c] sm:$0xf]
        %v579 = vld [vmem:[#allocation8 + $0x30] sm:$0xf]
        %v580 = vld [vmem:[#allocation8 + $0x34] sm:$0xf]
        %v581 = vld [vmem:[#allocation8 + $0x38] sm:$0xf]
        %v582 = vld [vmem:[#allocation8 + $0x3c] sm:$0xf]
        %v583 = vld [vmem:[%s6] sm:$0x1]
        %v585 = vlaneseq
        %v586 = vshrl.u32 %v585, 7
        %v587 = vsub.s32 0, %v586
        %v588 = vrot.slane %v583, %v587
        %v606 = vunpack.c.l.b16 %v567
        %v607 = vunpack.c.l.b16 %v568
        %v608 = vunpack.c.l.b16 %v569
        %v609 = vunpack.c.l.b16 %v570
        %v610 = vunpack.c.l.b16 %v571
        %v611 = vunpack.c.l.b16 %v572
        %v612 = vunpack.c.l.b16 %v573
        %v613 = vunpack.c.l.b16 %v574
        %v614 = vunpack.c.l.b16 %v575
        %v615 = vunpack.c.l.b16 %v576
        %v616 = vunpack.c.l.b16 %v577
        %v617 = vunpack.c.l.b16 %v578
        %v618 = vunpack.c.l.b16 %v579
        %v619 = vunpack.c.l.b16 %v580
        %v620 = vunpack.c.l.b16 %v581
        %v621 = vunpack.c.l.b16 %v582
        %v622 = vpack.c.b16 %v607, %v606
        %v623 = vpack.c.b16 %v609, %v608
        %v624 = vpack.c.b16 %v611, %v610
        %v625 = vpack.c.b16 %v613, %v612
        %v626 = vpack.c.b16 %v615, %v614
        %v627 = vpack.c.b16 %v617, %v616
        %v628 = vpack.c.b16 %v619, %v618
        %v629 = vpack.c.b16 %v621, %v620
        %638 = vmatprep.subr.bf16.mxu0 0
        %639 = vmatpush1.bf16.msra.mxu0 %v622
        %640 = vmatprep.subr.bf16.mxu0 0
        %641 = vmatpush1.bf16.msra.mxu0 %v623
        %642 = vmatprep.subr.bf16.mxu0 0
        %643 = vmatpush1.bf16.msra.mxu0 %v624
        %644 = vmatprep.subr.bf16.mxu0 0
        %645 = vmatpush1.bf16.msra.mxu0 %v625
        %646 = vmatprep.subr.bf16.mxu0 0
        %647 = vmatpush1.bf16.msra.mxu0 %v626
        %648 = vmatprep.subr.bf16.mxu0 0
        %649 = vmatpush1.bf16.msra.mxu0 %v627
        %650 = vmatprep.subr.bf16.mxu0 0
        %651 = vmatpush1.bf16.msra.mxu0 %v628
        %652 = vmatprep.subr.bf16.mxu0 0
        %653 = vmatpush1.bf16.msra.mxu0 %v629
        %654 = vmatprep.subr.bf16.mxu0 0
        %655 = vmatpush1.bf16.msra.mxu0 0
        %656 = vmatprep.subr.bf16.mxu0 0
        %657 = vmatpush1.bf16.msra.mxu0 0
        %658 = vmatprep.subr.bf16.mxu0 0
        %659 = vmatpush1.bf16.msra.mxu0 0
        %660 = vmatprep.subr.bf16.mxu0 0
        %661 = vmatpush1.bf16.msra.mxu0 0
        %662 = vmatprep.subr.bf16.mxu0 0
        %663 = vmatpush1.bf16.msra.mxu0 0
        %664 = vmatprep.subr.bf16.mxu0 0
        %665 = vmatpush1.bf16.msra.mxu0 0
        %666 = vmatprep.subr.bf16.mxu0 0
        %667 = vmatpush1.bf16.msra.mxu0 0
        %668 = vmatprep.subr.bf16.mxu0 0
        %669 = vmatpush1.bf16.msra.mxu0 0
        %670 = vmatprep.mubr.bf16.mxu0 0
        %671 = vmatmul.mubr.bf16.gmra.mrb[0].mxu0 %v566
        %v672 = vpop.f32.mrb[0].mxu0
        %v673 = vadd.f32 %v588, %v672
        %v674 = vpop.f32.mrb[0].mxu0
        %v675 = vpop.f32.mrb[0].mxu0
        %v676 = vpop.f32.mrb[0].mxu0
        %677 = vdwg.mxu0
        %v678 = vxor.u32 %v673, 2147483648
        %v679 = vmul.f32 %v678, 1.442695
        %v680 = vpow.pop %v679
        %v681 = vadd.f32 %v680, 1.0
        %v682 = vrcp.pop %v681
        %v683 = vmul.f32 1.0, %v682
        %684 = vst [vmem:[%s337] sm:$0xff] %v683
        %s685 = sand.u32 %s186, 1
        %s686 = scalar_lea.sflag [#allocation4], %s685
        %s687 = sand.u32 %s186, 1
        %s688 = smul.addr %s687, 8
        %s689 = scalar_lea.vmem [#allocation10], %s688
        // Predicated region
        $region65: #{tpu_custom_call.1} parent=47 // pred_check
          %p690 = pneg %p196
        $region66: #{tpu_custom_call.1} parent=47 // pred_check_branch
          %692 = sbr.rel (%p690) target = $region68
        $region67: #{tpu_custom_call.1} parent=47 // pred_region
          %s694 = ssub.s32 128, 128
          %695 = vsyncadd %s686, %s694
          %s696 = smul.addr %s26, 128
          %s697 = scalar_lea.hbm %s7, %s696
          %s699 = sshll.u32 %s689, 4
          %s700 = int_to_ptr.vmem [resolvable:$true] %s699
          %702 = dma.vmem_to_hbm [thread:$0]  %s700, 128, %s697, %s686
        $region68: #{tpu_custom_call.1} parent=47 // pred_fallthru
          _
      $region48: #{tpu_custom_call.1} parent=5 // pred_fallthru
        _
      %p703 = scmp.le.s32.totalorder 2, %s21
      // Predicated region
      $region69: #{tpu_custom_call.1} parent=5 // pred_check
        %p704 = pneg %p703
      $region70: #{tpu_custom_call.1} parent=5 // pred_check_branch
        %706 = sbr.rel (%p704) target = $region72
      $region71: #{tpu_custom_call.1} parent=5 // pred_region
        %s707 = ssub.s32 %s21, 2
        // Predicated region
        $region73: #{tpu_custom_call.1} parent=71 // pred_check
          %p708 = pneg %p202
        $region74: #{tpu_custom_call.1} parent=71 // pred_check_branch
          %710 = sbr.rel (%p708) target = $region76
        $region75: #{tpu_custom_call.1} parent=71 // pred_region
          %s711 = sand.u32 %s187, 1
          %s712 = scalar_lea.sflag [#allocation4], %s711
          %s713 = sand.u32 %s187, 1
          %s714 = smul.addr %s713, 8
          %s715 = scalar_lea.vmem [#allocation10], %s714
          %716 = dma.done %s712, 128
        $region76: #{tpu_custom_call.1} parent=71 // pred_fallthru
          _
      $region72: #{tpu_custom_call.1} parent=5 // pred_fallthru
        _
    $region6: #{tpu_custom_call.1} parent=1 // loop_footer
      %s25 = sadd.s32 1, %s21
    $region7: #{tpu_custom_call.1} parent=1 // loop_footer_branch
      %20 = sbr.rel target = $region3
    $region8: #{tpu_custom_call.1} parent=1 // loop_exit
      _
    %717 = vsyncpa [#allocation3], 1
    %s718 = scalar_lea.sflag [#allocation3], 1
    %719 = vsyncpa %s718, 1
    %720 = vsyncpa [#allocation6], 1
    %721 = vsyncpa [#allocation9], 1
    %722 = vsyncpa [#allocation4], 1
    %s723 = scalar_lea.sflag [#allocation4], 1
    %724 = vsyncpa %s723, 1

</llo_original>
